<compile_context>
chip_gen: v7x
topology: tpu7x:2x2x1
jax: 0.10.0
libtpu: 0.0.40
codegen_flags: <defaults>
</compile_context>

<pallas_src>
import jax
import jax.numpy as jnp
from jax.experimental import pallas as pl
from jax.experimental.pallas import tpu as pltpu


def _round_up(x: int, m: int) -> int:
    return (x + m - 1) // m * m


# ---------------------------------------------------------------------------
# Path A: tiny vocab, table resident in VMEM, gather == one-hot matmul (MXU).
# ---------------------------------------------------------------------------
def _one_hot_lookup(ids_3d, emb_table, *, tile_n, vmem_limit):
    num_tiles = ids_3d.shape[0]
    V, D = emb_table.shape

    def kernel(ids_ref, tbl_ref, out_ref):
        # ids_ref : (1, 1, tile_n) int32 — this tile's ids in VMEM.
        # tbl_ref : (V, D) table, VMEM-resident (constant index_map).
        # out_ref : (tile_n, D) output tile.
        ids = ids_ref[0, 0, :]                                    # (tile_n,)
        onehot = (
            ids[:, None]
            == jax.lax.broadcasted_iota(jnp.int32, (tile_n, V), 1)
        ).astype(tbl_ref.dtype)                                   # (tile_n, V)
        out_ref[...] = jnp.dot(
            onehot, tbl_ref[...], preferred_element_type=jnp.float32
        ).astype(out_ref.dtype)

    return pl.pallas_call(
        kernel,
        out_shape=jax.ShapeDtypeStruct((num_tiles * tile_n, D), emb_table.dtype),
        grid_spec=pltpu.PrefetchScalarGridSpec(
            num_scalar_prefetch=0,
            grid=(num_tiles,),
            in_specs=[
                # (1, tile_n) trailing dims == full array dims -> layout-safe.
                pl.BlockSpec((1, 1, tile_n), lambda i: (i, 0, 0)),
                # Constant index_map: table DMA'd HBM->VMEM once, reused.
                pl.BlockSpec((V, D), lambda i: (0, 0)),
            ],
            out_specs=pl.BlockSpec((tile_n, D), lambda i: (i, 0)),
        ),
        compiler_params=pltpu.CompilerParams(
            dimension_semantics=("parallel",),
            vmem_limit_bytes=vmem_limit,
        ),
    )(ids_3d, emb_table)


# ---------------------------------------------------------------------------
# Path B: row-DMA gather.  `resident=True` keeps the table in VMEM (no HBM
# read per token); `resident=False` leaves it in HBM and streams rows.
# ---------------------------------------------------------------------------
def _row_gather_lookup(ids_flat, emb_table, *, num_tiles, tile_n, resident,
                       vmem_limit=None):
    V, D = emb_table.shape
    n_pad = num_tiles * tile_n

    def kernel(ids_smem, emb_ref, out_ref, row_buf, sem):
        # ids_smem : (n_pad,) int32 scalar-prefetched ids (SMEM).
        # emb_ref  : (V, D) table (VMEM-resident block or raw HBM ref).
        # out_ref  : (tile_n, D) output tile (VMEM, auto-pipelined).
        # row_buf  : (tile_n, D) VMEM gather buffer.
        # sem      : (1,) shared DMA semaphore for all in-flight row fetches.
        base = pl.program_id(0) * tile_n

        def issue(t, carry):
            row = ids_smem[base + t]
            pltpu.make_async_copy(
                emb_ref.at[pl.ds(row, 1), :],
                row_buf.at[pl.ds(t, 1), :],
                sem.at[0],
            ).start()
            return carry

        # Keep all tile_n row fetches in flight before waiting on any of them.
        jax.lax.fori_loop(0, tile_n, issue, 0)

        def drain(t, carry):
            pltpu.make_async_copy(
                emb_ref.at[pl.ds(0, 1), :],        # shape-only descriptor
                row_buf.at[pl.ds(t, 1), :],
                sem.at[0],
            ).wait()
            return carry

        jax.lax.fori_loop(0, tile_n, drain, 0)

        out_ref[...] = row_buf[...]

    if resident:
        # Constant index_map: whole table DMA'd HBM->VMEM once, reused.
        table_spec = pl.BlockSpec((V, D), lambda i, ids: (0, 0))
    else:
        table_spec = pl.BlockSpec(memory_space=pl.ANY)

    cparams = {"dimension_semantics": ("parallel",)}
    if vmem_limit is not None:
        cparams["vmem_limit_bytes"] = vmem_limit

    return pl.pallas_call(
        kernel,
        out_shape=jax.ShapeDtypeStruct((n_pad, D), emb_table.dtype),
        grid_spec=pltpu.PrefetchScalarGridSpec(
            num_scalar_prefetch=1,                 # ids_flat -> SMEM
            grid=(num_tiles,),
            in_specs=[table_spec],
            out_specs=pl.BlockSpec((tile_n, D), lambda i, ids: (i, 0)),
            scratch_shapes=[
                pltpu.VMEM((tile_n, D), emb_table.dtype),
                pltpu.SemaphoreType.DMA((1,)),
            ],
        ),
        compiler_params=pltpu.CompilerParams(**cparams),
    )(ids_flat, emb_table)


# ---------------------------------------------------------------------------
# Public wrapper: equivalent of torch.nn.Embedding(V, D)(token_ids).
# ---------------------------------------------------------------------------
def embedding_lookup(
    token_ids: jnp.ndarray,
    emb_table: jnp.ndarray,
    *,
    tile_n: int = 128,
    # Conservative cross-generation default: with pipeline double-buffering of
    # the resident table block this stays under v7x's 64 MiB VMEM.  On
    # v5e/v6e (128 MiB VMEM) it can be raised.
    vmem_table_budget_bytes: int = 24 * 1024 * 1024,
    one_hot_max_vocab: int = 2048,
    force_dma_gather: bool = False,
) -> jnp.ndarray:
    V, D = emb_table.shape
    lead_shape = token_ids.shape

    # torch raises on out-of-range ids; clamp instead (no fine-grained bounds
    # checks on TPU).
    ids_flat = jnp.clip(token_ids.reshape(-1).astype(jnp.int32), 0, V - 1)
    n = ids_flat.shape[0]

    # TILE_N tokens per grid step, multiple of 8 (sublane-dense output tiles),
    # capped by the (padded) number of tokens.
    tile_n = _round_up(max(8, min(tile_n, _round_up(n, 8))), 8)
    n_pad = _round_up(n, tile_n)
    if n_pad != n:
        ids_flat = jnp.pad(ids_flat, (0, n_pad - n))   # pad with (valid) row 0
    num_tiles = n_pad // tile_n

    itemsize = jnp.dtype(emb_table.dtype).itemsize
    table_bytes = V * D * itemsize
    tile_bytes = tile_n * D * itemsize
    resident = (not force_dma_gather) and table_bytes <= vmem_table_budget_bytes

    if resident and V <= one_hot_max_vocab:
        # Budget: double-buffered table + output tiles + one-hot temporaries.
        vmem_limit = int(min(max(2 * table_bytes + 4 * tile_bytes
                                 + 3 * tile_n * V * 4 + (8 << 20),
                                 32 << 20), 128 << 20))
        out = _one_hot_lookup(
            ids_flat.reshape(num_tiles, 1, tile_n),
            emb_table,
            tile_n=tile_n,
            vmem_limit=vmem_limit,
        )
    else:
        vmem_limit = None
        if resident:
            vmem_limit = int(min(max(2 * table_bytes + 3 * tile_bytes + (8 << 20),
                                     32 << 20), 128 << 20))
        out = _row_gather_lookup(
            ids_flat, emb_table,
            num_tiles=num_tiles, tile_n=tile_n,
            resident=resident, vmem_limit=vmem_limit,
        )

    return out[:n].reshape(*lead_shape, D)


if __name__ == "__main__":
    d_model = 512          # nn.Embedding default d_model in the module
    key = jax.random.PRNGKey(0)

    def make_case(case_key, vocab_size, batch, seq):
        k_w, k_ids = jax.random.split(case_key)
        table = jax.random.normal(k_w, (vocab_size, d_model), dtype=jnp.float32)
        ids = jax.random.randint(k_ids, (batch, seq), 0, vocab_size,
                                 dtype=jnp.int32)
        return table, ids

    cases = [
        # (vocab, batch, seq, kwargs, description)
        (64,   2, 8,  {},                          "tiny vocab -> one-hot MXU gather"),
        (512,  2, 72, {},                          "multi-tile + padded tail, one-hot"),
        (4096, 2, 24, {},                          "medium vocab -> VMEM-resident row-DMA gather"),
        (64,   2, 8,  {"force_dma_gather": True},  "HBM row-DMA gather fallback"),
    ]

    for idx, (V, B, S, kw, desc) in enumerate(cases):
        table, token_ids = make_case(jax.random.fold_in(key, idx), V, B, S)
        out = jax.block_until_ready(embedding_lookup(token_ids, table, **kw))
        ref = jnp.take(table, token_ids, axis=0)
        assert out.shape == (B, S, d_model), (desc, out.shape)
        assert out.dtype == table.dtype, (desc, out.dtype)
        assert jnp.allclose(out, ref, rtol=1e-5, atol=1e-5), f"mismatch: {desc}"

    print("KERNEL_OK")
</pallas_src>

<mosaic_0001>
module attributes {stable_mosaic.version = 11 : i64} {
  func.func @kernel(%arg0: i32, %arg1: memref<1x1x16xi32, #tpu.memory_space<vmem>>, %arg2: memref<64x512xf32, #tpu.memory_space<vmem>>, %arg3: memref<16x512xf32, #tpu.memory_space<vmem>>) attributes {dimension_semantics = [#tpu.dimension_semantics<parallel>], iteration_bounds = array<i64: 1>, scalar_prefetch = 0 : i64, scratch_operands = 0 : i64, tpu.core_type = #tpu.core_type<tc>, window_params = [{transform_indices = @transform_0, window_bounds = array<i64: 1, 1, 16>}, {pipeline_mode = #tpu.pipeline_mode<synchronous>, transform_indices = @transform_1, window_bounds = array<i64: 64, 512>}, {transform_indices = @transform_2, window_bounds = array<i64: 16, 512>}]} {
    %c0 = arith.constant 0 : index
    %c0_0 = arith.constant 0 : index
    %c0_1 = arith.constant 0 : index
    %0 = vector.load %arg1[%c0, %c0_0, %c0_1] : memref<1x1x16xi32, #tpu.memory_space<vmem>>, vector<1x1x16xi32>
    %1 = vector.shape_cast %0 : vector<1x1x16xi32> to vector<16xi32>
    %2 = vector.shape_cast %1 : vector<16xi32> to vector<16x1xi32>
    %3 = tpu.iota {dimensions = array<i32: 1>} : vector<16x64xi32>
    %4 = vector.broadcast %2 : vector<16x1xi32> to vector<16x64xi32>
    %5 = arith.cmpi eq, %4, %3 : vector<16x64xi32>
    %6 = arith.extui %5 : vector<16x64xi1> to vector<16x64xi32>
    %7 = arith.sitofp %6 : vector<16x64xi32> to vector<16x64xf32>
    %c0_2 = arith.constant 0 : index
    %c0_3 = arith.constant 0 : index
    %8 = vector.load %arg2[%c0_2, %c0_3] : memref<64x512xf32, #tpu.memory_space<vmem>>, vector<64x512xf32>
    %cst = arith.constant dense<0.000000e+00> : vector<16x512xf32>
    %9 = tpu.matmul %7, %8, %cst {dimension_numbers = #tpu.dot_dimension_numbers<[1], [0], [0], [1], [0, 0, 1, 1], [], []>} : vector<16x64xf32>, vector<64x512xf32>, vector<16x512xf32> -> vector<16x512xf32>
    %c0_4 = arith.constant 0 : index
    %c0_5 = arith.constant 0 : index
    %10 = vector.load %arg3[%c0_4, %c0_5] : memref<16x512xf32, #tpu.memory_space<vmem>>, vector<16x512xf32>
    tpu.vector_store %arg3[%c0_4, %c0_5], %9 {strides = array<i32>} : memref<16x512xf32, #tpu.memory_space<vmem>>, vector<16x512xf32>,
    return
  }
  func.func @transform_0(%arg0: i32) -> (i32, i32, i32) {
    %c0_i32 = arith.constant 0 : i32
    %c0_i32_0 = arith.constant 0 : i32
    %c0_i32_1 = arith.constant 0 : i32
    return %arg0, %c0_i32, %c0_i32_0 : i32, i32, i32
  }
  func.func @transform_1(%arg0: i32) -> (i32, i32) {
    %c0_i32 = arith.constant 0 : i32
    %c0_i32_0 = arith.constant 0 : i32
    %c0_i32_1 = arith.constant 0 : i32
    return %c0_i32, %c0_i32_0 : i32, i32
  }
  func.func @transform_2(%arg0: i32) -> (i32, i32) {
    %c0_i32 = arith.constant 0 : i32
    %c0_i32_0 = arith.constant 0 : i32
    return %arg0, %c0_i32 : i32, i32
  }
}

</mosaic_0001>

<llo_original>
// kernel: tpu_custom_call.1
$region0: #{tpu_custom_call.1}
  #allocation0 [shape = 'u32[]', space=smem, size = 0x4, offset = 0x4, fixed_abs, tag = 'smem constant byte address 0x4 - core index']
  #allocation1 [shape = 'u32[144,128]{1,0:T(1,128)}', space=vmem, size = 0x12000, scoped, tag = 'internal scratch']
  %s0 = inlined_call_operand.hbm [shape: s32[1,1,16], index: 0, kind: input, shape index: {}]
  %s1 = inlined_call_operand.hbm [shape: f32[64,512], index: 1, kind: input, shape index: {}]
  %s2 = inlined_call_operand.hbm [shape: f32[16,512], index: 2, kind: output, shape index: {}]
  %s3 = sld [smem:[#allocation0]]
  $region26: #{tpu_custom_call.1} parent=0
    _
  %s5 = ssub.s32 1, %s3
  %s6 = scalar_select 0, %s5, %s3
  $region1: #{tpu_custom_call.1} parent=0
    #allocation2 [shape = 'u8[512]{0}', space=vmem, size = 0x400, scoped, tag = 'input window, operand 0, single buffered']
    #allocation3 [shape = 's32[1]{0}', space=sflag, size = 0x4, scoped, tag = 'scoped memory for tpu_custom_call.1']
    #allocation4 [shape = 's32[1]{0}', space=sflag, size = 0x4, scoped, tag = 'scoped memory for tpu_custom_call.1']
    #allocation5 [shape = 'u8[131072]{0}', space=vmem, size = 0x20000, scoped, tag = 'input window, operand 1, single buffered']
    #allocation6 [shape = 's32[1]{0}', space=sflag, size = 0x4, scoped, tag = 'scoped memory for tpu_custom_call.1']
    #allocation7 [shape = 'u8[32768]{0}', space=vmem, size = 0x8000, scoped, tag = 'output window, operand 0, single buffered']
    %7 = vsyncpa [#allocation3], 0
    %8 = vsyncpa [#allocation6], 0
    %9 = vsyncpa [#allocation4], 0
    // Predicated region
    $region2: #{tpu_custom_call.1} parent=1 // pred_check
      _
    $region3: #{tpu_custom_call.1} parent=1 // pred_check_branch
      %11 = sbr.rel (0) target = $region5
    $region4: #{tpu_custom_call.1} parent=1 // pred_region
      %s13 = ssub.s32 16, 16
      %14 = vsyncadd [#allocation3], %s13
      %s16 = sshll.u32 [#allocation2], 4
      %s17 = int_to_ptr.vmem [resolvable:$true] %s16
      %19 = dma.hbm_to_vmem [thread:$0]  %s0, 16, %s17, [#allocation3]
    $region5: #{tpu_custom_call.1} parent=1 // pred_fallthru
      _
    // Predicated region
    $region6: #{tpu_custom_call.1} parent=1 // pred_check
      _
    $region7: #{tpu_custom_call.1} parent=1 // pred_check_branch
      %21 = sbr.rel (0) target = $region9
    $region8: #{tpu_custom_call.1} parent=1 // pred_region
      %s23 = ssub.s32 4096, 4096
      %24 = vsyncadd [#allocation6], %s23
      %s25 = sshll.u32 [#allocation5], 4
      %s26 = int_to_ptr.vmem [resolvable:$true] %s25
      %31 = dma.hbm_to_vmem [thread:$0]  %s1, 4096, %s26, [#allocation6], 512, 512, 32
    $region9: #{tpu_custom_call.1} parent=1 // pred_fallthru
      _
    // Predicated region
    $region10: #{tpu_custom_call.1} parent=1 // pred_check
      _
    $region11: #{tpu_custom_call.1} parent=1 // pred_check_branch
      %33 = sbr.rel (0) target = $region13
    $region12: #{tpu_custom_call.1} parent=1 // pred_region
      %34 = dma.done [#allocation3], 16
    $region13: #{tpu_custom_call.1} parent=1 // pred_fallthru
      _
    // Predicated region
    $region14: #{tpu_custom_call.1} parent=1 // pred_check
      _
    $region15: #{tpu_custom_call.1} parent=1 // pred_check_branch
      %36 = sbr.rel (0) target = $region17
    $region16: #{tpu_custom_call.1} parent=1 // pred_region
      %37 = dma.done [#allocation6], 4096
    $region17: #{tpu_custom_call.1} parent=1 // pred_fallthru
      _
    %v38 = vld [vmem:[#allocation2] sm:$0x1]
    %v39 = vlaneseq
    %v40 = vshrl.u32 %v39, 7
    %v41 = vsub.s32 0, %v40
    %v42 = vrot.slane %v38, %v41
    %44 = vbcast.lane.b32.xlu0 %v42, 256
    %v45 = vpop.permute.xlu0 %44
    %s47 = sor.u32 256, 8
    %48 = vbcast.lane.b32.xlu0 %v42, %s47
    %v49 = vpop.permute.xlu0 %48
    %v50 = vlaneseq
    %v51 = vand.u32 %v50, 127
    %vm52 = vcmp.eq.s32.totalorder %v45, %v51
    %vm53 = vcmp.eq.s32.totalorder %v49, %v51
    %v54 = vsel %vm52, 1, 0
    %v55 = vsel %vm53, 1, 0
    %v56 = vcvt.s32.f32 %v54
    %v57 = vcvt.s32.f32 %v55
    %v58 = vld [vmem:[#allocation5] sm:$0xff]
    %v59 = vld [vmem:[#allocation5 + $0x8] sm:$0xff]
    %v60 = vld [vmem:[#allocation5 + $0x10] sm:$0xff]
    %v61 = vld [vmem:[#allocation5 + $0x18] sm:$0xff]
    %v62 = vld [vmem:[#allocation5 + $0x20] sm:$0xff]
    %v63 = vld [vmem:[#allocation5 + $0x28] sm:$0xff]
    %v64 = vld [vmem:[#allocation5 + $0x30] sm:$0xff]
    %v65 = vld [vmem:[#allocation5 + $0x38] sm:$0xff]
    %v66 = vld [vmem:[#allocation5 + $0x40] sm:$0xff]
    %v67 = vld [vmem:[#allocation5 + $0x48] sm:$0xff]
    %v68 = vld [vmem:[#allocation5 + $0x50] sm:$0xff]
    %v69 = vld [vmem:[#allocation5 + $0x58] sm:$0xff]
    %v70 = vld [vmem:[#allocation5 + $0x60] sm:$0xff]
    %v71 = vld [vmem:[#allocation5 + $0x68] sm:$0xff]
    %v72 = vld [vmem:[#allocation5 + $0x70] sm:$0xff]
    %v73 = vld [vmem:[#allocation5 + $0x78] sm:$0xff]
    %v74 = vld [vmem:[#allocation5 + $0x80] sm:$0xff]
    %v75 = vld [vmem:[#allocation5 + $0x88] sm:$0xff]
    %v76 = vld [vmem:[#allocation5 + $0x90] sm:$0xff]
    %v77 = vld [vmem:[#allocation5 + $0x98] sm:$0xff]
    %v78 = vld [vmem:[#allocation5 + $0xa0] sm:$0xff]
    %v79 = vld [vmem:[#allocation5 + $0xa8] sm:$0xff]
    %v80 = vld [vmem:[#allocation5 + $0xb0] sm:$0xff]
    %v81 = vld [vmem:[#allocation5 + $0xb8] sm:$0xff]
    %v82 = vld [vmem:[#allocation5 + $0xc0] sm:$0xff]
    %v83 = vld [vmem:[#allocation5 + $0xc8] sm:$0xff]
    %v84 = vld [vmem:[#allocation5 + $0xd0] sm:$0xff]
    %v85 = vld [vmem:[#allocation5 + $0xd8] sm:$0xff]
    %v86 = vld [vmem:[#allocation5 + $0xe0] sm:$0xff]
    %v87 = vld [vmem:[#allocation5 + $0xe8] sm:$0xff]
    %v88 = vld [vmem:[#allocation5 + $0xf0] sm:$0xff]
    %v89 = vld [vmem:[#allocation5 + $0xf8] sm:$0xff]
    %vm90 = vcmask 523264
    %v92 = vsel %vm90, %v56, 0
    %v95 = vsel %vm90, %v57, 0
    %97 = vmatprep.subr.mxu0 %v59
    %98 = vmatpush1.msra.mxu0 %v58
    %99 = vmatprep.subr.mxu0 %v63
    %100 = vmatpush1.msra.mxu0 %v62
    %101 = vmatprep.subr.mxu0 %v67
    %102 = vmatpush1.msra.mxu0 %v66
    %103 = vmatprep.subr.mxu0 %v71
    %104 = vmatpush1.msra.mxu0 %v70
    %105 = vmatprep.subr.mxu0 %v75
    %106 = vmatpush1.msra.mxu0 %v74
    %107 = vmatprep.subr.mxu0 %v79
    %108 = vmatpush1.msra.mxu0 %v78
    %109 = vmatprep.subr.mxu0 %v83
    %110 = vmatpush1.msra.mxu0 %v82
    %111 = vmatprep.subr.mxu0 %v87
    %112 = vmatpush1.msra.mxu0 %v86
    %113 = vmatprep.subr.mxu0 0.0
    %114 = vmatpush1.msra.mxu0 0.0
    %115 = vmatprep.subr.mxu0 0.0
    %116 = vmatpush1.msra.mxu0 0.0
    %117 = vmatprep.subr.mxu0 0.0
    %118 = vmatpush1.msra.mxu0 0.0
    %119 = vmatprep.subr.mxu0 0.0
    %120 = vmatpush1.msra.mxu0 0.0
    %121 = vmatprep.subr.mxu0 0.0
    %122 = vmatpush1.msra.mxu0 0.0
    %123 = vmatprep.subr.mxu0 0.0
    %124 = vmatpush1.msra.mxu0 0.0
    %125 = vmatprep.subr.mxu0 0.0
    %126 = vmatpush1.msra.mxu0 0.0
    %127 = vmatprep.subr.mxu0 0.0
    %128 = vmatpush1.msra.mxu0 0.0
    %129 = vmatprep.subr.mxu0 0.0
    %130 = vmatpush1.msra.mxu0 0.0
    %131 = vmatprep.subr.mxu0 0.0
    %132 = vmatpush1.msra.mxu0 0.0
    %133 = vmatprep.subr.mxu0 0.0
    %134 = vmatpush1.msra.mxu0 0.0
    %135 = vmatprep.subr.mxu0 0.0
    %136 = vmatpush1.msra.mxu0 0.0
    %137 = vmatprep.subr.mxu0 0.0
    %138 = vmatpush1.msra.mxu0 0.0
    %139 = vmatprep.subr.mxu0 0.0
    %140 = vmatpush1.msra.mxu0 0.0
    %141 = vmatprep.subr.mxu0 0.0
    %142 = vmatpush1.msra.mxu0 0.0
    %143 = vmatprep.subr.mxu0 0.0
    %144 = vmatpush1.msra.mxu0 0.0
    %145 = vmatprep.subr.mxu0 0.0
    %146 = vmatpush1.msra.mxu0 0.0
    %147 = vmatprep.subr.mxu0 0.0
    %148 = vmatpush1.msra.mxu0 0.0
    %149 = vmatprep.subr.mxu0 0.0
    %150 = vmatpush1.msra.mxu0 0.0
    %151 = vmatprep.subr.mxu0 0.0
    %152 = vmatpush1.msra.mxu0 0.0
    %153 = vmatprep.subr.mxu0 0.0
    %154 = vmatpush1.msra.mxu0 0.0
    %155 = vmatprep.subr.mxu0 0.0
    %156 = vmatpush1.msra.mxu0 0.0
    %157 = vmatprep.subr.mxu0 0.0
    %158 = vmatpush1.msra.mxu0 0.0
    %159 = vmatprep.subr.mxu0 0.0
    %160 = vmatpush1.msra.mxu0 0.0
    %161 = vmatprep.mubr.f32.mxu0 0.0
    %162 = vmatmul.mubr.f32.gmra.mrb[0].mxu0 %v92
    %v163 = vpop.f32.mrb[0].mxu0
    %v164 = vadd.f32 0.0, %v163
    %v165 = vpop.f32.mrb[0].mxu0
    %v166 = vadd.f32 0.0, %v165
    %167 = vmatprep.mubr.f32.mxu0 0.0
    %168 = vmatmul.mubr.f32.gmra.mrb[0].mxu0 %v95
    %v169 = vpop.f32.mrb[0].mxu0
    %v170 = vadd.f32 0.0, %v169
    %v171 = vpop.f32.mrb[0].mxu0
    %v172 = vadd.f32 0.0, %v171
    %173 = vdwg.mxu0
    %174 = vmatprep.subr.mxu0 %v61
    %175 = vmatpush1.msra.mxu0 %v60
    %176 = vmatprep.subr.mxu0 %v65
    %177 = vmatpush1.msra.mxu0 %v64
    %178 = vmatprep.subr.mxu0 %v69
    %179 = vmatpush1.msra.mxu0 %v68
    %180 = vmatprep.subr.mxu0 %v73
    %181 = vmatpush1.msra.mxu0 %v72
    %182 = vmatprep.subr.mxu0 %v77
    %183 = vmatpush1.msra.mxu0 %v76
    %184 = vmatprep.subr.mxu0 %v81
    %185 = vmatpush1.msra.mxu0 %v80
    %186 = vmatprep.subr.mxu0 %v85
    %187 = vmatpush1.msra.mxu0 %v84
    %188 = vmatprep.subr.mxu0 %v89
    %189 = vmatpush1.msra.mxu0 %v88
    %190 = vmatprep.subr.mxu0 0.0
    %191 = vmatpush1.msra.mxu0 0.0
    %192 = vmatprep.subr.mxu0 0.0
    %193 = vmatpush1.msra.mxu0 0.0
    %194 = vmatprep.subr.mxu0 0.0
    %195 = vmatpush1.msra.mxu0 0.0
    %196 = vmatprep.subr.mxu0 0.0
    %197 = vmatpush1.msra.mxu0 0.0
    %198 = vmatprep.subr.mxu0 0.0
    %199 = vmatpush1.msra.mxu0 0.0
    %200 = vmatprep.subr.mxu0 0.0
    %201 = vmatpush1.msra.mxu0 0.0
    %202 = vmatprep.subr.mxu0 0.0
    %203 = vmatpush1.msra.mxu0 0.0
    %204 = vmatprep.subr.mxu0 0.0
    %205 = vmatpush1.msra.mxu0 0.0
    %206 = vmatprep.subr.mxu0 0.0
    %207 = vmatpush1.msra.mxu0 0.0
    %208 = vmatprep.subr.mxu0 0.0
    %209 = vmatpush1.msra.mxu0 0.0
    %210 = vmatprep.subr.mxu0 0.0
    %211 = vmatpush1.msra.mxu0 0.0
    %212 = vmatprep.subr.mxu0 0.0
    %213 = vmatpush1.msra.mxu0 0.0
    %214 = vmatprep.subr.mxu0 0.0
    %215 = vmatpush1.msra.mxu0 0.0
    %216 = vmatprep.subr.mxu0 0.0
    %217 = vmatpush1.msra.mxu0 0.0
    %218 = vmatprep.subr.mxu0 0.0
    %219 = vmatpush1.msra.mxu0 0.0
    %220 = vmatprep.subr.mxu0 0.0
    %221 = vmatpush1.msra.mxu0 0.0
    %222 = vmatprep.subr.mxu0 0.0
    %223 = vmatpush1.msra.mxu0 0.0
    %224 = vmatprep.subr.mxu0 0.0
    %225 = vmatpush1.msra.mxu0 0.0
    %226 = vmatprep.subr.mxu0 0.0
    %227 = vmatpush1.msra.mxu0 0.0
    %228 = vmatprep.subr.mxu0 0.0
    %229 = vmatpush1.msra.mxu0 0.0
    %230 = vmatprep.subr.mxu0 0.0
    %231 = vmatpush1.msra.mxu0 0.0
    %232 = vmatprep.subr.mxu0 0.0
    %233 = vmatpush1.msra.mxu0 0.0
    %234 = vmatprep.subr.mxu0 0.0
    %235 = vmatpush1.msra.mxu0 0.0
    %236 = vmatprep.subr.mxu0 0.0
    %237 = vmatpush1.msra.mxu0 0.0
    %238 = vmatprep.mubr.f32.mxu0 0.0
    %239 = vmatmul.mubr.f32.gmra.mrb[0].mxu0 %v92
    %v240 = vpop.f32.mrb[0].mxu0
    %v241 = vadd.f32 0.0, %v240
    %v242 = vpop.f32.mrb[0].mxu0
    %v243 = vadd.f32 0.0, %v242
    %244 = vmatprep.mubr.f32.mxu0 0.0
    %245 = vmatmul.mubr.f32.gmra.mrb[0].mxu0 %v95
    %v246 = vpop.f32.mrb[0].mxu0
    %v247 = vadd.f32 0.0, %v246
    %v248 = vpop.f32.mrb[0].mxu0
    %v249 = vadd.f32 0.0, %v248
    %250 = vdwg.mxu0
    %251 = vst [vmem:[#allocation7] sm:$0xff] %v164
    %252 = vst [vmem:[#allocation7 + $0x8] sm:$0xff] %v166
    %253 = vst [vmem:[#allocation7 + $0x10] sm:$0xff] %v241
    %254 = vst [vmem:[#allocation7 + $0x18] sm:$0xff] %v243
    %255 = vst [vmem:[#allocation7 + $0x20] sm:$0xff] %v170
    %256 = vst [vmem:[#allocation7 + $0x28] sm:$0xff] %v172
    %257 = vst [vmem:[#allocation7 + $0x30] sm:$0xff] %v247
    %258 = vst [vmem:[#allocation7 + $0x38] sm:$0xff] %v249
    // Predicated region
    $region18: #{tpu_custom_call.1} parent=1 // pred_check
      _
    $region19: #{tpu_custom_call.1} parent=1 // pred_check_branch
      %260 = sbr.rel (0) target = $region21
    $region20: #{tpu_custom_call.1} parent=1 // pred_region
      %s262 = ssub.s32 1024, 1024
      %263 = vsyncadd [#allocation4], %s262
      %s264 = sshll.u32 [#allocation7], 4
      %s265 = int_to_ptr.vmem [resolvable:$true] %s264
      %270 = dma.vmem_to_hbm [thread:$0]  %s265, 1024, %s2, [#allocation4], 512, 512, 32
    $region21: #{tpu_custom_call.1} parent=1 // pred_fallthru
      _
    // Predicated region
    $region22: #{tpu_custom_call.1} parent=1 // pred_check
      _
    $region23: #{tpu_custom_call.1} parent=1 // pred_check_branch
      %272 = sbr.rel (0) target = $region25
    $region24: #{tpu_custom_call.1} parent=1 // pred_region
      %273 = dma.done [#allocation4], 1024
    $region25: #{tpu_custom_call.1} parent=1 // pred_fallthru
      _
    %274 = vsyncpa [#allocation3], 1
    %275 = vsyncpa [#allocation6], 1
    %276 = vsyncpa [#allocation4], 1

</llo_original>
